<compile_context>
chip_gen: v5e
topology: v5e:2x2
jax: 0.10.0
libtpu: 0.0.40
codegen_flags: <defaults>
</compile_context>

<pallas_src>
import functools

import jax
import jax.numpy as jnp
from jax import lax
from jax.experimental import pallas as pl
from jax.experimental.pallas import tpu as pltpu

_KPAD = 128  # lane-dense output slab width (k must be <= _KPAD)


def _mix32(h):
    """splitmix/murmur-style 32-bit finalizer (good avalanche, all VPU int ops)."""
    h = h ^ (h >> 16)
    h = h * jnp.uint32(0x7FEB352D)
    h = h ^ (h >> 15)
    h = h * jnp.uint32(0x846CA68B)
    h = h ^ (h >> 16)
    return h


def _gumbel_topk_kernel(seed_ref, logits_ref, vals_ref, idx_ref, *,
                        k: int, tau: float, training: bool, block_b: int):
    # logits tile: (TB, N); top-k is over the last (lane) axis.
    xin = logits_ref[...]
    tb, n = xin.shape
    col = lax.broadcasted_iota(jnp.int32, (tb, n), 1)

    if training:
        work = xin.astype(jnp.float32)
        # Stateless counter-based hash PRNG: value depends only on
        # (seed, global_row, col) -> independent of grid order / core placement.
        # Split into a per-row and a per-col pre-mixed partial so only a short
        # finalizer runs at full (TB, N) width.
        row0 = pl.program_id(0) * block_b
        rowu = (row0 + lax.broadcasted_iota(jnp.int32, (tb, 1), 0)).astype(jnp.uint32)
        colu = lax.broadcasted_iota(jnp.int32, (1, n), 1).astype(jnp.uint32)
        seedu = seed_ref[0].astype(jnp.uint32)

        hr = _mix32(rowu * jnp.uint32(0x9E3779B1) + seedu * jnp.uint32(0xC2B2AE3D))
        hc = _mix32(colu * jnp.uint32(0x85EBCA77))
        h = hr ^ hc                                   # (TB, N) broadcast combine
        h = h ^ (h >> 16)
        h = h * jnp.uint32(0x9E3779B1)
        h = h ^ (h >> 13)

        # 23 random mantissa bits -> m in [1, 2) -> u = (m - 1) + 2^-24 in (0, 1)
        # (strictly inside, so both logs stay finite: no clamp, no inflated tail).
        mant = (h >> 9) | jnp.uint32(0x3F800000)
        m = lax.bitcast_convert_type(mant, jnp.float32)
        u = (m - jnp.float32(1.0)) + jnp.float32(1.0 / (1 << 24))
        e = -jnp.log(u)            # Exponential(1)
        g = -jnp.log(e)            # Gumbel(0,1)
        # TODO(synk): on v6e/v7x the two logs could run in bf16 on the EUP for ~2x
        # transcendental throughput; kept f32 for bit-stable noise across chips.
        # NOTE: /tau deferred — ordering is invariant for tau>0; only the k
        # selected values are scaled below.
        work = work + g
    else:
        # Eval: compare/select directly in bf16 when the input is bf16
        # (halves vreg traffic); other dtypes promoted to f32.
        work = xin if xin.dtype == jnp.bfloat16 else xin.astype(jnp.float32)

    lane = lax.broadcasted_iota(jnp.int32, (tb, _KPAD), 1)
    neg_inf = jnp.asarray(-jnp.inf, work.dtype)
    scale = jnp.float32(1.0 / tau) if (training and tau != 1.0) else None

    vals_slab = jnp.zeros((tb, _KPAD), jnp.float32)
    idx_slab = jnp.zeros((tb, _KPAD), jnp.int32)
    # k is a small Python int -> static unrolled selection loop.
    # Iteratively: row max, first index of that max, mask it out.
    # TODO(synk): for k >= ~16 with large N, pre-reduce to a per-lane candidate
    # set first (removes repeated full-width passes per pick).
    for kk in range(k):
        mx = jnp.max(work, axis=-1, keepdims=True)                       # (TB, 1)
        hit = work == mx
        idx = jnp.min(jnp.where(hit, col, jnp.int32(n)),
                      axis=-1, keepdims=True)                            # (TB, 1)
        v = mx.astype(jnp.float32)
        if scale is not None:
            v = v * scale
        sel = lane == kk
        vals_slab = jnp.where(sel, v, vals_slab)
        idx_slab = jnp.where(sel, idx, idx_slab)
        if training:
            # Continuous noise -> ties are measure-zero; reuse `hit` and drop
            # the extra full-width (col == idx) compare.
            work = jnp.where(hit, neg_inf, work)
        else:
            # Exact tie semantics (kill only the selected index) -> matches
            # lax.top_k / torch.topk ordering with duplicate values.
            work = jnp.where(col == idx, neg_inf, work)

    # Lane-dense (TB, 128) stores -> unmasked vst; wrapper slices [:, :k].
    vals_ref[...] = vals_slab.astype(vals_ref.dtype)
    idx_ref[...] = idx_slab


def _vmem_plan():
    """(block budget, vmem_limit_bytes, max block rows) derived from the chip's
    per-TensorCore VMEM capacity (v7x: 64 MiB; v5e/v6e: 128 MiB)."""
    try:
        info = pltpu.get_tpu_info()
        vmem_cap = int(getattr(info, "vmem_capacity_bytes", 0)) or (128 << 20)
    except Exception:  # pragma: no cover - be robust off-TPU / old jax
        vmem_cap = 128 << 20
    if vmem_cap <= (64 << 20):           # v7x-class part
        return 12 << 20, 28 << 20, 2048
    return 28 << 20, 64 << 20, 4096      # v5e / v6e (128 MiB)


def _pick_block_b(batch: int, n: int, itemsize: int, *,
                  step: int, budget_bytes: int, max_rows: int) -> int:
    """Largest row block (multiple of the sublane step) fitting the VMEM budget,
    while keeping >= 2 grid steps when the batch allows it (v7x megacore)."""
    # input double-buffer + ~8 f32 working copies + double-buffered output slabs
    per_row = 2 * n * itemsize + 8 * n * 4 + 2 * 2 * _KPAD * 4
    cap = (budget_bytes // per_row) // step * step
    cap = int(max(step, min(cap, max_rows)))
    if batch >= 2 * step:
        # Keep at least 2 grid steps so dimension_semantics=("parallel",) can
        # shard the batch axis across both v7x TensorCores; free on 1-TC parts.
        half = max(step, (batch // 2) // step * step)
        cap = min(cap, half)
    b_pad_full = -(-batch // step) * step
    return min(cap, b_pad_full)


def gumbel_topk(logits: jax.Array, k: int, *, tau: float = 1.0,
                training: bool = True, seed: int = 0, block_b: int | None = None):
    """Pallas implementation of GumbelTopK.forward(logits, k, dim=-1)."""
    assert logits.ndim == 2, "kernel operates on (B, N); reshape leading dims outside"
    B, N = logits.shape
    assert 0 < k <= min(N, _KPAD), "k must be <= min(N, 128) for this kernel"
    assert tau > 0, "tau must be > 0 (deferred-division relies on ordering invariance)"

    itemsize = jnp.dtype(logits.dtype).itemsize
    step = max(8, 32 // max(itemsize, 1))          # sublane packing: 8 f32 / 16 bf16 / 32 int8
    budget_bytes, vmem_limit, max_rows = _vmem_plan()

    if block_b is None:
        block_b = _pick_block_b(B, N, itemsize, step=step,
                                budget_bytes=budget_bytes, max_rows=max_rows)
    assert block_b % step == 0 or block_b == B, (
        f"block_b must be a multiple of {step} (or == batch) to satisfy TPU tiling")

    grid_steps = -(-B // block_b)                  # ceil div
    B_pad = grid_steps * block_b
    x = logits if B_pad == B else jnp.pad(logits, ((0, B_pad - B), (0, 0)))

    kernel = functools.partial(_gumbel_topk_kernel, k=k, tau=float(tau),
                               training=training, block_b=block_b)
    seed_arr = jnp.asarray([seed], dtype=jnp.int32)

    vals_p, idx_p = pl.pallas_call(
        kernel,
        out_shape=(jax.ShapeDtypeStruct((B_pad, _KPAD), logits.dtype),
                   jax.ShapeDtypeStruct((B_pad, _KPAD), jnp.int32)),
        grid_spec=pltpu.PrefetchScalarGridSpec(
            num_scalar_prefetch=1,                 # seed lands in SMEM
            grid=(grid_steps,),
            in_specs=[pl.BlockSpec((block_b, N), lambda i, seed: (i, 0))],
            out_specs=(pl.BlockSpec((block_b, _KPAD), lambda i, seed: (i, 0)),
                       pl.BlockSpec((block_b, _KPAD), lambda i, seed: (i, 0)))),
        compiler_params=pltpu.CompilerParams(
            dimension_semantics=("parallel",),     # batch axis is independent
            vmem_limit_bytes=vmem_limit),
    )(seed_arr, x)

    # TODO(synk): torch returns int64 indices; int32 is the natural TPU dtype.
    # TODO(synk): if these logits come from a projection (h @ W), fuse that
    # matmul into this kernel (grid over K + f32 accumulator) so the (B, N)
    # logits never round-trip HBM.
    return vals_p[:B, :k], idx_p[:B, :k]


if __name__ == "__main__":
    key = jax.random.PRNGKey(0)
    B, N, K = 16, 256, 5
    logits = jax.random.normal(key, (B, N), dtype=jnp.float32)

    # ---- eval mode (module.training == False): plain top-k ----
    vals_e, idx_e = gumbel_topk(logits, K, tau=1.0, training=False)
    jax.block_until_ready((vals_e, idx_e))
    ref_vals, ref_idx = jax.lax.top_k(logits, K)
    assert jnp.allclose(vals_e, ref_vals, atol=1e-6), "eval values mismatch"
    assert jnp.array_equal(idx_e, ref_idx), "eval indices mismatch"

    # ---- training mode: Gumbel-perturbed top-k (sampling w/o replacement) ----
    vals_t, idx_t = gumbel_topk(logits, K, tau=1.0, training=True, seed=1234)
    jax.block_until_ready((vals_t, idx_t))
    assert vals_t.shape == (B, K) and idx_t.shape == (B, K)
    assert vals_t.dtype == logits.dtype and idx_t.dtype == jnp.int32
    assert bool(jnp.all(jnp.isfinite(vals_t)))
    # values sorted descending along last axis
    assert bool(jnp.all(vals_t[:, 1:] <= vals_t[:, :-1] + 1e-6))
    # indices within each row are distinct (without replacement)
    srt = jnp.sort(idx_t, axis=-1)
    assert bool(jnp.all(srt[:, 1:] != srt[:, :-1]))
    assert bool(jnp.all((idx_t >= 0) & (idx_t < N)))

    # ---- training with non-trivial tau (deferred 1/tau scaling path) ----
    vals_tau, idx_tau = gumbel_topk(logits, K, tau=0.5, training=True, seed=7)
    jax.block_until_ready((vals_tau, idx_tau))
    assert bool(jnp.all(jnp.isfinite(vals_tau)))

    # ---- awkward batch size (exercises the padding path) ----
    logits_odd = jax.random.normal(jax.random.PRNGKey(1), (11, N), dtype=jnp.float32)
    v_o, i_o = gumbel_topk(logits_odd, K, training=False)
    jax.block_until_ready((v_o, i_o))
    rv, ri = jax.lax.top_k(logits_odd, K)
    assert jnp.allclose(v_o, rv, atol=1e-6) and jnp.array_equal(i_o, ri)

    print("KERNEL_OK")
</pallas_src>

<mosaic_0001>
module attributes {stable_mosaic.version = 11 : i64} {
  func.func @_gumbel_topk_kernel(%arg0: i32, %arg1: memref<1xi32, #tpu.memory_space<smem>>, %arg2: memref<8x256xf32, #tpu.memory_space<vmem>>, %arg3: memref<8x128xf32, #tpu.memory_space<vmem>>, %arg4: memref<8x128xi32, #tpu.memory_space<vmem>>) attributes {dimension_semantics = [#tpu.dimension_semantics<parallel>], iteration_bounds = array<i64: 2>, scalar_prefetch = 1 : i64, scratch_operands = 0 : i64, tpu.core_type = #tpu.core_type<tc>, window_params = [{transform_indices = @transform_0, window_bounds = array<i64: 8, 256>}, {transform_indices = @transform_1, window_bounds = array<i64: 8, 128>}, {transform_indices = @transform_2, window_bounds = array<i64: 8, 128>}]} {
    %c0 = arith.constant 0 : index
    %c0_0 = arith.constant 0 : index
    %0 = vector.load %arg2[%c0, %c0_0] : memref<8x256xf32, #tpu.memory_space<vmem>>, vector<8x256xf32>
    %1 = tpu.iota {dimensions = array<i32: 1>} : vector<8x256xi32>
    %2 = tpu.iota {dimensions = array<i32: 1>} : vector<8x128xi32>
    %cst = arith.constant 0.000000e+00 : f32
    %3 = vector.broadcast %cst : f32 to vector<8x128xf32>
    %c0_i32 = arith.constant 0 : i32
    %4 = vector.broadcast %c0_i32 : i32 to vector<8x128xi32>
    %cst_1 = arith.constant dense<0xFF800000> : vector<8xf32>
    %5 = vector.multi_reduction <maximumf>, %0, %cst_1 [1] : vector<8x256xf32> to vector<8xf32>
    %6 = vector.shape_cast %5 : vector<8xf32> to vector<8x1xf32>
    %7 = vector.broadcast %6 : vector<8x1xf32> to vector<8x256xf32>
    %8 = arith.cmpf oeq, %0, %7 : vector<8x256xf32>
    %c256_i32 = arith.constant 256 : i32
    %9 = vector.broadcast %c256_i32 : i32 to vector<8x256xi32>
    %10 = arith.select %8, %1, %9 : vector<8x256xi1>, vector<8x256xi32>
    %cst_2 = arith.constant dense<2147483647> : vector<8xi32>
    %11 = vector.multi_reduction <minsi>, %10, %cst_2 [1] : vector<8x256xi32> to vector<8xi32>
    %12 = vector.shape_cast %11 : vector<8xi32> to vector<8x1xi32>
    %c0_i32_3 = arith.constant 0 : i32
    %13 = vector.broadcast %c0_i32_3 : i32 to vector<8x128xi32>
    %14 = arith.cmpi eq, %2, %13 : vector<8x128xi32>
    %15 = vector.shape_cast %6 : vector<8x1xf32> to vector<8x1xf32>
    %16 = vector.broadcast %15 : vector<8x1xf32> to vector<8x128xf32>
    %17 = arith.select %14, %16, %3 : vector<8x128xi1>, vector<8x128xf32>
    %18 = vector.shape_cast %12 : vector<8x1xi32> to vector<8x1xi32>
    %19 = vector.broadcast %18 : vector<8x1xi32> to vector<8x128xi32>
    %20 = arith.select %14, %19, %4 : vector<8x128xi1>, vector<8x128xi32>
    %21 = vector.broadcast %12 : vector<8x1xi32> to vector<8x256xi32>
    %22 = arith.cmpi eq, %1, %21 : vector<8x256xi32>
    %cst_4 = arith.constant 0xFF800000 : f32
    %23 = vector.broadcast %cst_4 : f32 to vector<8x256xf32>
    %24 = arith.select %22, %23, %0 : vector<8x256xi1>, vector<8x256xf32>
    %cst_5 = arith.constant dense<0xFF800000> : vector<8xf32>
    %25 = vector.multi_reduction <maximumf>, %24, %cst_5 [1] : vector<8x256xf32> to vector<8xf32>
    %26 = vector.shape_cast %25 : vector<8xf32> to vector<8x1xf32>
    %27 = vector.broadcast %26 : vector<8x1xf32> to vector<8x256xf32>
    %28 = arith.cmpf oeq, %24, %27 : vector<8x256xf32>
    %c256_i32_6 = arith.constant 256 : i32
    %29 = vector.broadcast %c256_i32_6 : i32 to vector<8x256xi32>
    %30 = arith.select %28, %1, %29 : vector<8x256xi1>, vector<8x256xi32>
    %cst_7 = arith.constant dense<2147483647> : vector<8xi32>
    %31 = vector.multi_reduction <minsi>, %30, %cst_7 [1] : vector<8x256xi32> to vector<8xi32>
    %32 = vector.shape_cast %31 : vector<8xi32> to vector<8x1xi32>
    %c1_i32 = arith.constant 1 : i32
    %33 = vector.broadcast %c1_i32 : i32 to vector<8x128xi32>
    %34 = arith.cmpi eq, %2, %33 : vector<8x128xi32>
    %35 = vector.shape_cast %26 : vector<8x1xf32> to vector<8x1xf32>
    %36 = vector.broadcast %35 : vector<8x1xf32> to vector<8x128xf32>
    %37 = arith.select %34, %36, %17 : vector<8x128xi1>, vector<8x128xf32>
    %38 = vector.shape_cast %32 : vector<8x1xi32> to vector<8x1xi32>
    %39 = vector.broadcast %38 : vector<8x1xi32> to vector<8x128xi32>
    %40 = arith.select %34, %39, %20 : vector<8x128xi1>, vector<8x128xi32>
    %41 = vector.broadcast %32 : vector<8x1xi32> to vector<8x256xi32>
    %42 = arith.cmpi eq, %1, %41 : vector<8x256xi32>
    %cst_8 = arith.constant 0xFF800000 : f32
    %43 = vector.broadcast %cst_8 : f32 to vector<8x256xf32>
    %44 = arith.select %42, %43, %24 : vector<8x256xi1>, vector<8x256xf32>
    %cst_9 = arith.constant dense<0xFF800000> : vector<8xf32>
    %45 = vector.multi_reduction <maximumf>, %44, %cst_9 [1] : vector<8x256xf32> to vector<8xf32>
    %46 = vector.shape_cast %45 : vector<8xf32> to vector<8x1xf32>
    %47 = vector.broadcast %46 : vector<8x1xf32> to vector<8x256xf32>
    %48 = arith.cmpf oeq, %44, %47 : vector<8x256xf32>
    %c256_i32_10 = arith.constant 256 : i32
    %49 = vector.broadcast %c256_i32_10 : i32 to vector<8x256xi32>
    %50 = arith.select %48, %1, %49 : vector<8x256xi1>, vector<8x256xi32>
    %cst_11 = arith.constant dense<2147483647> : vector<8xi32>
    %51 = vector.multi_reduction <minsi>, %50, %cst_11 [1] : vector<8x256xi32> to vector<8xi32>
    %52 = vector.shape_cast %51 : vector<8xi32> to vector<8x1xi32>
    %c2_i32 = arith.constant 2 : i32
    %53 = vector.broadcast %c2_i32 : i32 to vector<8x128xi32>
    %54 = arith.cmpi eq, %2, %53 : vector<8x128xi32>
    %55 = vector.shape_cast %46 : vector<8x1xf32> to vector<8x1xf32>
    %56 = vector.broadcast %55 : vector<8x1xf32> to vector<8x128xf32>
    %57 = arith.select %54, %56, %37 : vector<8x128xi1>, vector<8x128xf32>
    %58 = vector.shape_cast %52 : vector<8x1xi32> to vector<8x1xi32>
    %59 = vector.broadcast %58 : vector<8x1xi32> to vector<8x128xi32>
    %60 = arith.select %54, %59, %40 : vector<8x128xi1>, vector<8x128xi32>
    %61 = vector.broadcast %52 : vector<8x1xi32> to vector<8x256xi32>
    %62 = arith.cmpi eq, %1, %61 : vector<8x256xi32>
    %cst_12 = arith.constant 0xFF800000 : f32
    %63 = vector.broadcast %cst_12 : f32 to vector<8x256xf32>
    %64 = arith.select %62, %63, %44 : vector<8x256xi1>, vector<8x256xf32>
    %cst_13 = arith.constant dense<0xFF800000> : vector<8xf32>
    %65 = vector.multi_reduction <maximumf>, %64, %cst_13 [1] : vector<8x256xf32> to vector<8xf32>
    %66 = vector.shape_cast %65 : vector<8xf32> to vector<8x1xf32>
    %67 = vector.broadcast %66 : vector<8x1xf32> to vector<8x256xf32>
    %68 = arith.cmpf oeq, %64, %67 : vector<8x256xf32>
    %c256_i32_14 = arith.constant 256 : i32
    %69 = vector.broadcast %c256_i32_14 : i32 to vector<8x256xi32>
    %70 = arith.select %68, %1, %69 : vector<8x256xi1>, vector<8x256xi32>
    %cst_15 = arith.constant dense<2147483647> : vector<8xi32>
    %71 = vector.multi_reduction <minsi>, %70, %cst_15 [1] : vector<8x256xi32> to vector<8xi32>
    %72 = vector.shape_cast %71 : vector<8xi32> to vector<8x1xi32>
    %c3_i32 = arith.constant 3 : i32
    %73 = vector.broadcast %c3_i32 : i32 to vector<8x128xi32>
    %74 = arith.cmpi eq, %2, %73 : vector<8x128xi32>
    %75 = vector.shape_cast %66 : vector<8x1xf32> to vector<8x1xf32>
    %76 = vector.broadcast %75 : vector<8x1xf32> to vector<8x128xf32>
    %77 = arith.select %74, %76, %57 : vector<8x128xi1>, vector<8x128xf32>
    %78 = vector.shape_cast %72 : vector<8x1xi32> to vector<8x1xi32>
    %79 = vector.broadcast %78 : vector<8x1xi32> to vector<8x128xi32>
    %80 = arith.select %74, %79, %60 : vector<8x128xi1>, vector<8x128xi32>
    %81 = vector.broadcast %72 : vector<8x1xi32> to vector<8x256xi32>
    %82 = arith.cmpi eq, %1, %81 : vector<8x256xi32>
    %cst_16 = arith.constant 0xFF800000 : f32
    %83 = vector.broadcast %cst_16 : f32 to vector<8x256xf32>
    %84 = arith.select %82, %83, %64 : vector<8x256xi1>, vector<8x256xf32>
    %cst_17 = arith.constant dense<0xFF800000> : vector<8xf32>
    %85 = vector.multi_reduction <maximumf>, %84, %cst_17 [1] : vector<8x256xf32> to vector<8xf32>
    %86 = vector.shape_cast %85 : vector<8xf32> to vector<8x1xf32>
    %87 = vector.broadcast %86 : vector<8x1xf32> to vector<8x256xf32>
    %88 = arith.cmpf oeq, %84, %87 : vector<8x256xf32>
    %c256_i32_18 = arith.constant 256 : i32
    %89 = vector.broadcast %c256_i32_18 : i32 to vector<8x256xi32>
    %90 = arith.select %88, %1, %89 : vector<8x256xi1>, vector<8x256xi32>
    %cst_19 = arith.constant dense<2147483647> : vector<8xi32>
    %91 = vector.multi_reduction <minsi>, %90, %cst_19 [1] : vector<8x256xi32> to vector<8xi32>
    %92 = vector.shape_cast %91 : vector<8xi32> to vector<8x1xi32>
    %c4_i32 = arith.constant 4 : i32
    %93 = vector.broadcast %c4_i32 : i32 to vector<8x128xi32>
    %94 = arith.cmpi eq, %2, %93 : vector<8x128xi32>
    %95 = vector.shape_cast %86 : vector<8x1xf32> to vector<8x1xf32>
    %96 = vector.broadcast %95 : vector<8x1xf32> to vector<8x128xf32>
    %97 = arith.select %94, %96, %77 : vector<8x128xi1>, vector<8x128xf32>
    %98 = vector.shape_cast %92 : vector<8x1xi32> to vector<8x1xi32>
    %99 = vector.broadcast %98 : vector<8x1xi32> to vector<8x128xi32>
    %100 = arith.select %94, %99, %80 : vector<8x128xi1>, vector<8x128xi32>
    %c0_20 = arith.constant 0 : index
    %c0_21 = arith.constant 0 : index
    %101 = vector.load %arg3[%c0_20, %c0_21] : memref<8x128xf32, #tpu.memory_space<vmem>>, vector<8x128xf32>
    tpu.vector_store %arg3[%c0_20, %c0_21], %97 {strides = array<i32>} : memref<8x128xf32, #tpu.memory_space<vmem>>, vector<8x128xf32>,
    %c0_22 = arith.constant 0 : index
    %c0_23 = arith.constant 0 : index
    %102 = vector.load %arg4[%c0_22, %c0_23] : memref<8x128xi32, #tpu.memory_space<vmem>>, vector<8x128xi32>
    tpu.vector_store %arg4[%c0_22, %c0_23], %100 {strides = array<i32>} : memref<8x128xi32, #tpu.memory_space<vmem>>, vector<8x128xi32>,
    return
  }
  func.func @transform_0(%arg0: i32, %arg1: memref<1xi32, #tpu.memory_space<smem>>) -> (i32, i32) {
    %c0_i32 = arith.constant 0 : i32
    %c0_i32_0 = arith.constant 0 : i32
    return %arg0, %c0_i32 : i32, i32
  }
  func.func @transform_1(%arg0: i32, %arg1: memref<1xi32, #tpu.memory_space<smem>>) -> (i32, i32) {
    %c0_i32 = arith.constant 0 : i32
    %c0_i32_0 = arith.constant 0 : i32
    return %arg0, %c0_i32 : i32, i32
  }
  func.func @transform_2(%arg0: i32, %arg1: memref<1xi32, #tpu.memory_space<smem>>) -> (i32, i32) {
    %c0_i32 = arith.constant 0 : i32
    %c0_i32_0 = arith.constant 0 : i32
    return %arg0, %c0_i32 : i32, i32
  }
}

</mosaic_0001>

<llo_original>
// kernel: tpu_custom_call.1
$region0: #{tpu_custom_call.1}
  #allocation0 [shape = 'u32[]', space=smem, size = 0x4, offset = 0x4, fixed_abs, tag = 'smem constant byte address 0x4 - core index']
  #allocation1 [shape = 'u32[72,128]{1,0:T(1,128)}', space=vmem, size = 0x9000, scoped, tag = 'internal scratch']
  #allocation2 [shape = 's32[1]{0}', space=sflag, size = 0x4, scoped, tag = 'scoped memory for tpu_custom_call.1']
  #allocation3 [shape = 's32[1]{0:T(128)S(6)}', space=smem, size = 0x200, scoped, tag = 'prefetched SMEM operand 0']
  %s0 = inlined_call_operand.<no memory space> [shape: s32[1], index: 0, kind: input, shape index: {}]
  %s1 = inlined_call_operand.hbm [shape: f32[16,256], index: 1, kind: input, shape index: {}]
  %s2 = inlined_call_operand.hbm [shape: f32[16,128], index: 2, kind: output, shape index: {0}]
  %s3 = inlined_call_operand.hbm [shape: s32[16,128], index: 3, kind: output, shape index: {1}]
  %4 = xla_tuple %s2, %s3
  %s5 = sld [smem:[#allocation0]]
  $region49: #{tpu_custom_call.1} parent=0
    _
  %s7 = ssub.s32 1, %s5
  %s8 = scalar_select 0, %s7, %s5
  %9 = sst [smem:[#allocation3]] %s0
  $region1: #{tpu_custom_call.1} parent=0
    #allocation4 [shape = 'u8[16384]{0}', space=vmem, size = 0x4000, scoped, tag = 'input window, operand 1']
    #allocation5 [shape = 's32[2]{0}', space=sflag, size = 0x8, scoped, tag = 'scoped memory for tpu_custom_call.1']
    #allocation6 [shape = 's32[2]{0}', space=sflag, size = 0x8, scoped, tag = 'scoped memory for tpu_custom_call.1']
    #allocation7 [shape = 'u8[8192]{0}', space=vmem, size = 0x2000, scoped, tag = 'output window, operand 0']
    #allocation8 [shape = 'u8[8192]{0}', space=vmem, size = 0x2000, scoped, tag = 'output window, operand 1']
    #allocation9 [shape = 's32[2]{0}', space=sflag, size = 0x8, scoped, tag = 'scoped memory for tpu_custom_call.1']
    %10 = vsyncpa [#allocation5], 0
    %s11 = scalar_lea.sflag [#allocation5], 1
    %12 = vsyncpa %s11, 0
    %13 = vsyncpa [#allocation6], 0
    %s14 = scalar_lea.sflag [#allocation6], 1
    %15 = vsyncpa %s14, 0
    %16 = vsyncpa [#allocation9], 0
    %s17 = scalar_lea.sflag [#allocation9], 1
    %18 = vsyncpa %s17, 0
    loop: start=0, step=1, limit=4
    $region2: #{tpu_custom_call.1} parent=1 // loop_pre_header
      _
    $region3: #{tpu_custom_call.1} parent=1 // loop_header
      %s20 = sphi 0, %s24
      %p21 = scmp.ge.s32.totalorder %s20, 4
      %s30 = sphi 0, %s32
      %s33 = sphi 0, %s30
      %s34 = sphi 0, %s33
      %s50 = sphi 0, %s34
      %s56 = sphi 0, %s58
      %s59 = sphi 0, %s56
      %s60 = sphi 0, %s59
      %s76 = sphi 0, %s60
      %s82 = sphi 0, %s84
      %s85 = sphi 0, %s82
      %s86 = sphi 0, %s85
      %s102 = sphi 0, %s86
    $region4: #{tpu_custom_call.1} parent=1 // loop_header_branch
      %23 = sbr.rel (%p21) target = $region8
    $region5: #{tpu_custom_call.1} parent=1 // loop_body
      %s25 = ssub.s32 %s20, 1
      %s26 = ssub.s32 %s20, 2
      %s27 = sadd.s32 %s20, 1
      %s28 = ssub.s32 %s20, %s27
      %p29 = scmp.eq.s32.totalorder %s28, 0
      %s31 = sadd.s32 %s30, 1
      %s32 = scalar_select %p29, %s30, %s31
      %p35 = pneg %p29
      %p36 = scmp.eq.s32.totalorder %s20, 1
      %p37 = por %p35, %p36
      %p38 = scmp.ne.s32.totalorder %s30, %s33
      %p39 = scmp.eq.s32.totalorder %s20, 0
      %p40 = por %p38, %p39
      %p41 = scmp.ne.s32.totalorder %s30, %s33
      %p42 = scmp.eq.s32.totalorder %s25, 1
      %p43 = por %p41, %p42
      %p44 = scmp.ne.s32.totalorder %s33, %s34
      %p45 = scmp.eq.s32.totalorder %s25, 0
      %p46 = por %p44, %p45
      %p47 = scmp.ne.s32.totalorder %s33, %s34
      %p48 = scmp.eq.s32.totalorder %s26, 1
      %p49 = por %p47, %p48
      %p51 = scmp.ne.s32.totalorder %s34, %s50
      %p52 = scmp.eq.s32.totalorder %s26, 0
      %p53 = por %p51, %p52
      %s54 = ssub.s32 %s20, %s27
      %p55 = scmp.eq.s32.totalorder %s54, 0
      %s57 = sadd.s32 %s56, 1
      %s58 = scalar_select %p55, %s56, %s57
      %p61 = pneg %p55
      %p62 = scmp.eq.s32.totalorder %s20, 1
      %p63 = por %p61, %p62
      %p64 = scmp.ne.s32.totalorder %s56, %s59
      %p65 = scmp.eq.s32.totalorder %s20, 0
      %p66 = por %p64, %p65
      %p67 = scmp.ne.s32.totalorder %s56, %s59
      %p68 = scmp.eq.s32.totalorder %s25, 1
      %p69 = por %p67, %p68
      %p70 = scmp.ne.s32.totalorder %s59, %s60
      %p71 = scmp.eq.s32.totalorder %s25, 0
      %p72 = por %p70, %p71
      %p73 = scmp.ne.s32.totalorder %s59, %s60
      %p74 = scmp.eq.s32.totalorder %s26, 1
      %p75 = por %p73, %p74
      %p77 = scmp.ne.s32.totalorder %s60, %s76
      %p78 = scmp.eq.s32.totalorder %s26, 0
      %p79 = por %p77, %p78
      %s80 = ssub.s32 %s20, %s27
      %p81 = scmp.eq.s32.totalorder %s80, 0
      %s83 = sadd.s32 %s82, 1
      %s84 = scalar_select %p81, %s82, %s83
      %p87 = pneg %p81
      %p88 = scmp.eq.s32.totalorder %s20, 1
      %p89 = por %p87, %p88
      %p90 = scmp.ne.s32.totalorder %s82, %s85
      %p91 = scmp.eq.s32.totalorder %s20, 0
      %p92 = por %p90, %p91
      %p93 = scmp.ne.s32.totalorder %s82, %s85
      %p94 = scmp.eq.s32.totalorder %s25, 1
      %p95 = por %p93, %p94
      %p96 = scmp.ne.s32.totalorder %s85, %s86
      %p97 = scmp.eq.s32.totalorder %s25, 0
      %p98 = por %p96, %p97
      %p99 = scmp.ne.s32.totalorder %s85, %s86
      %p100 = scmp.eq.s32.totalorder %s26, 1
      %p101 = por %p99, %p100
      %p103 = scmp.ne.s32.totalorder %s86, %s102
      %p104 = scmp.eq.s32.totalorder %s26, 0
      %p105 = por %p103, %p104
      %p106 = scmp.le.s32.totalorder 1, %s20
      %p107 = scmp.lt.s32.totalorder %s20, 3
      %p108 = pnand %p106, %p107
      %p109 = pneg %p108
      // Predicated region
      $region9: #{tpu_custom_call.1} parent=5 // pred_check
        _
      $region10: #{tpu_custom_call.1} parent=5 // pred_check_branch
        %111 = sbr.rel (%p108) target = $region12
      $region11: #{tpu_custom_call.1} parent=5 // pred_region
        %s112 = ssub.s32 %s20, 1
      $region12: #{tpu_custom_call.1} parent=5 // pred_fallthru
        _
      %p113 = scmp.lt.s32.totalorder %s20, 2
      // Predicated region
      $region13: #{tpu_custom_call.1} parent=5 // pred_check
        %p114 = pneg %p113
      $region14: #{tpu_custom_call.1} parent=5 // pred_check_branch
        %116 = sbr.rel (%p114) target = $region16
      $region15: #{tpu_custom_call.1} parent=5 // pred_region
        // Predicated region
        $region17: #{tpu_custom_call.1} parent=15 // pred_check
          %p117 = pneg %p40
        $region18: #{tpu_custom_call.1} parent=15 // pred_check_branch
          %119 = sbr.rel (%p117) target = $region20
        $region19: #{tpu_custom_call.1} parent=15 // pred_region
          %s120 = sand.u32 %s30, 1
          %s121 = scalar_lea.sflag [#allocation5], %s120
          %s122 = sand.u32 %s30, 1
          %s123 = smul.addr %s122, 16
          %s124 = scalar_lea.vmem [#allocation4], %s123
          %126 = vsyncadd %s121, 0
          %s127 = smul.addr %s20, 2
          %s128 = smul.addr %s127, 8
          %s129 = scalar_lea.hbm %s1, %s128
          %s131 = sshll.u32 %s129, 4
          %s132 = int_to_ptr.hbm [resolvable:$true] %s131
          %s133 = sshll.u32 %s124, 4
          %s134 = int_to_ptr.vmem [resolvable:$true] %s133
          %136 = dma.hbm_to_vmem [thread:$0]  %s132, 256, %s134, %s121
        $region20: #{tpu_custom_call.1} parent=15 // pred_fallthru
          _
      $region16: #{tpu_custom_call.1} parent=5 // pred_fallthru
        _
      %p137 = scmp.le.s32.totalorder 1, %s20
      %p138 = scmp.lt.s32.totalorder %s20, 3
      %p139 = pnand %p137, %p138
      %p140 = pneg %p139
      // Predicated region
      $region21: #{tpu_custom_call.1} parent=5 // pred_check
        _
      $region22: #{tpu_custom_call.1} parent=5 // pred_check_branch
        %142 = sbr.rel (%p139) target = $region24
      $region23: #{tpu_custom_call.1} parent=5 // pred_region
        %s143 = ssub.s32 %s20, 1
        %s144 = sand.u32 %s33, 1
        %s145 = scalar_lea.sflag [#allocation5], %s144
        %s146 = sand.u32 %s33, 1
        %s147 = smul.addr %s146, 16
        %s148 = scalar_lea.vmem [#allocation4], %s147
        // Predicated region
        $region25: #{tpu_custom_call.1} parent=23 // pred_check
          %p149 = pneg %p46
        $region26: #{tpu_custom_call.1} parent=23 // pred_check_branch
          %151 = sbr.rel (%p149) target = $region28
        $region27: #{tpu_custom_call.1} parent=23 // pred_region
          %153 = dma.done %s145, 256
        $region28: #{tpu_custom_call.1} parent=23 // pred_fallthru
          _
        %s154 = sand.u32 %s33, 1
        %s155 = scalar_lea.sflag [#allocation5], %s154
        %s156 = sand.u32 %s33, 1
        %s157 = smul.addr %s156, 16
        %s158 = scalar_lea.vmem [#allocation4], %s157
        %p159 = pneg %p46
        %p160 = pneg %p43
        %p161 = pneg %p72
        %p162 = pneg %p69
        %s163 = sand.u32 %s59, 1
        %s164 = scalar_lea.sflag [#allocation6], %s163
        %s165 = sand.u32 %s59, 1
        %s166 = smul.addr %s165, 8
        %s167 = scalar_lea.vmem [#allocation7], %s166
        %p168 = pneg %p98
        %p169 = pneg %p95
        %s170 = sand.u32 %s85, 1
        %s171 = scalar_lea.sflag [#allocation9], %s170
        %s172 = sand.u32 %s85, 1
        %s173 = smul.addr %s172, 8
        %s174 = scalar_lea.vmem [#allocation8], %s173
        %v175 = vld [vmem:[%s148] sm:$0xff]
        %v176 = vld [vmem:[%s148 + $0x8] sm:$0xff]
        %v177 = vlaneseq
        %v178 = vand.u32 %v177, 127
        %v179 = vadd.s32 %v178, 128
        %v180 = vmax.f32 %v175, %v176
        %181 = vmax.xlane.f32.xlu0 %v180
        %v182 = vpop.xlane.xlu0 %181
        %vm183 = vcmp.eq.f32.partialorder %v175, %v182
        %vm184 = vcmp.eq.f32.partialorder %v176, %v182
        %v185 = vsel %vm183, %v178, 256
        %v186 = vsel %vm184, %v179, 256
        %vm187 = vcmp.lt.s32.totalorder %v185, %v186
        %v188 = vsel %vm187, %v185, %v186
        %v189 = vand.u32 %v188, 65535
        %v190 = vshra.s32 %v188, 16
        %v191 = vcvt.s32.f32 %v189
        %v192 = vcvt.s32.f32 %v190
        %193 = vmin.xlane.f32.xlu0 %v192
        %v194 = vpop.xlane.xlu0 %193
        %vm195 = vcmp.eq.f32.partialorder %v192, %v194
        %v196 = vsel %vm195, %v191, inf
        %197 = vmin.xlane.f32.xlu0 %v196
        %v198 = vpop.xlane.xlu0 %197
        %v199 = vcvt.f32.s32 %v198
        %v200 = vcvt.f32.s32 %v194
        %v201 = vshll.u32 %v200, 16
        %v202 = vadd.s32 %v201, %v199
        %vm203 = vcmp.eq.s32.totalorder %v178, 0
        %v204 = vsel %vm203, %v182, 0.0
        %v205 = vsel %vm203, %v202, 0
        %vm206 = vcmp.eq.s32.totalorder %v178, %v202
        %vm207 = vcmp.eq.s32.totalorder %v179, %v202
        %v208 = vsel %vm206, -inf, %v175
        %v209 = vsel %vm207, -inf, %v176
        %v210 = vmax.f32 %v208, %v209
        %211 = vmax.xlane.f32.xlu0 %v210
        %v212 = vpop.xlane.xlu0 %211
        %vm213 = vcmp.eq.f32.partialorder %v208, %v212
        %vm214 = vcmp.eq.f32.partialorder %v209, %v212
        %v215 = vsel %vm213, %v178, 256
        %v216 = vsel %vm214, %v179, 256
        %vm217 = vcmp.lt.s32.totalorder %v215, %v216
        %v218 = vsel %vm217, %v215, %v216
        %v219 = vand.u32 %v218, 65535
        %v220 = vshra.s32 %v218, 16
        %v221 = vcvt.s32.f32 %v219
        %v222 = vcvt.s32.f32 %v220
        %223 = vmin.xlane.f32.xlu0 %v222
        %v224 = vpop.xlane.xlu0 %223
        %vm225 = vcmp.eq.f32.partialorder %v222, %v224
        %v226 = vsel %vm225, %v221, inf
        %227 = vmin.xlane.f32.xlu0 %v226
        %v228 = vpop.xlane.xlu0 %227
        %v229 = vcvt.f32.s32 %v228
        %v230 = vcvt.f32.s32 %v224
        %v231 = vshll.u32 %v230, 16
        %v232 = vadd.s32 %v231, %v229
        %vm233 = vcmp.eq.s32.totalorder %v178, 1
        %v234 = vsel %vm233, %v212, %v204
        %v235 = vsel %vm233, %v232, %v205
        %vm236 = vcmp.eq.s32.totalorder %v178, %v232
        %vm237 = vcmp.eq.s32.totalorder %v179, %v232
        %v238 = vsel %vm236, -inf, %v208
        %v239 = vsel %vm237, -inf, %v209
        %v240 = vmax.f32 %v238, %v239
        %241 = vmax.xlane.f32.xlu0 %v240
        %v242 = vpop.xlane.xlu0 %241
        %vm243 = vcmp.eq.f32.partialorder %v238, %v242
        %vm244 = vcmp.eq.f32.partialorder %v239, %v242
        %v245 = vsel %vm243, %v178, 256
        %v246 = vsel %vm244, %v179, 256
        %vm247 = vcmp.lt.s32.totalorder %v245, %v246
        %v248 = vsel %vm247, %v245, %v246
        %v249 = vand.u32 %v248, 65535
        %v250 = vshra.s32 %v248, 16
        %v251 = vcvt.s32.f32 %v249
        %v252 = vcvt.s32.f32 %v250
        %253 = vmin.xlane.f32.xlu0 %v252
        %v254 = vpop.xlane.xlu0 %253
        %vm255 = vcmp.eq.f32.partialorder %v252, %v254
        %v256 = vsel %vm255, %v251, inf
        %257 = vmin.xlane.f32.xlu0 %v256
        %v258 = vpop.xlane.xlu0 %257
        %v259 = vcvt.f32.s32 %v258
        %v260 = vcvt.f32.s32 %v254
        %v261 = vshll.u32 %v260, 16
        %v262 = vadd.s32 %v261, %v259
        %vm263 = vcmp.eq.s32.totalorder %v178, 2
        %v264 = vsel %vm263, %v242, %v234
        %v265 = vsel %vm263, %v262, %v235
        %vm266 = vcmp.eq.s32.totalorder %v178, %v262
        %vm267 = vcmp.eq.s32.totalorder %v179, %v262
        %v268 = vsel %vm266, -inf, %v238
        %v269 = vsel %vm267, -inf, %v239
        %v270 = vmax.f32 %v268, %v269
        %271 = vmax.xlane.f32.xlu0 %v270
        %v272 = vpop.xlane.xlu0 %271
        %vm273 = vcmp.eq.f32.partialorder %v268, %v272
        %vm274 = vcmp.eq.f32.partialorder %v269, %v272
        %v275 = vsel %vm273, %v178, 256
        %v276 = vsel %vm274, %v179, 256
        %vm277 = vcmp.lt.s32.totalorder %v275, %v276
        %v278 = vsel %vm277, %v275, %v276
        %v279 = vand.u32 %v278, 65535
        %v280 = vshra.s32 %v278, 16
        %v281 = vcvt.s32.f32 %v279
        %v282 = vcvt.s32.f32 %v280
        %283 = vmin.xlane.f32.xlu0 %v282
        %v284 = vpop.xlane.xlu0 %283
        %vm285 = vcmp.eq.f32.partialorder %v282, %v284
        %v286 = vsel %vm285, %v281, inf
        %287 = vmin.xlane.f32.xlu0 %v286
        %v288 = vpop.xlane.xlu0 %287
        %v289 = vcvt.f32.s32 %v288
        %v290 = vcvt.f32.s32 %v284
        %v291 = vshll.u32 %v290, 16
        %v292 = vadd.s32 %v291, %v289
        %vm293 = vcmp.eq.s32.totalorder %v178, 3
        %v294 = vsel %vm293, %v272, %v264
        %v295 = vsel %vm293, %v292, %v265
        %vm296 = vcmp.eq.s32.totalorder %v178, %v292
        %vm297 = vcmp.eq.s32.totalorder %v179, %v292
        %v298 = vsel %vm296, -inf, %v268
        %v299 = vsel %vm297, -inf, %v269
        %v300 = vmax.f32 %v298, %v299
        %301 = vmax.xlane.f32.xlu0 %v300
        %v302 = vpop.xlane.xlu0 %301
        %vm303 = vcmp.eq.f32.partialorder %v298, %v302
        %vm304 = vcmp.eq.f32.partialorder %v299, %v302
        %v305 = vsel %vm303, %v178, 256
        %v306 = vsel %vm304, %v179, 256
        %vm307 = vcmp.lt.s32.totalorder %v305, %v306
        %v308 = vsel %vm307, %v305, %v306
        %v309 = vand.u32 %v308, 65535
        %v310 = vshra.s32 %v308, 16
        %v311 = vcvt.s32.f32 %v309
        %v312 = vcvt.s32.f32 %v310
        %313 = vmin.xlane.f32.xlu0 %v312
        %v314 = vpop.xlane.xlu0 %313
        %vm315 = vcmp.eq.f32.partialorder %v312, %v314
        %v316 = vsel %vm315, %v311, inf
        %317 = vmin.xlane.f32.xlu0 %v316
        %v318 = vpop.xlane.xlu0 %317
        %v319 = vcvt.f32.s32 %v318
        %v320 = vcvt.f32.s32 %v314
        %v321 = vshll.u32 %v320, 16
        %v322 = vadd.s32 %v321, %v319
        %vm323 = vcmp.eq.s32.totalorder %v178, 4
        %v324 = vsel %vm323, %v302, %v294
        %v325 = vsel %vm323, %v322, %v295
        %326 = vst [vmem:[%s167] sm:$0xff] %v324
        %327 = vst [vmem:[%s174] sm:$0xff] %v325
        %s328 = sand.u32 %s59, 1
        %s329 = scalar_lea.sflag [#allocation6], %s328
        %s330 = sand.u32 %s59, 1
        %s331 = smul.addr %s330, 8
        %s332 = scalar_lea.vmem [#allocation7], %s331
        %s333 = sand.u32 %s85, 1
        %s334 = scalar_lea.sflag [#allocation9], %s333
        %s335 = sand.u32 %s85, 1
        %s336 = smul.addr %s335, 8
        %s337 = scalar_lea.vmem [#allocation8], %s336
        // Predicated region
        $region29: #{tpu_custom_call.1} parent=23 // pred_check
          %p338 = pneg %p69
        $region30: #{tpu_custom_call.1} parent=23 // pred_check_branch
          %340 = sbr.rel (%p338) target = $region32
        $region31: #{tpu_custom_call.1} parent=23 // pred_region
          %342 = vsyncadd %s329, 0
          %s343 = smul.addr %s25, 8
          %s344 = scalar_lea.hbm %s2, %s343
          %s346 = sshll.u32 %s332, 4
          %s347 = int_to_ptr.vmem [resolvable:$true] %s346
          %s348 = sshll.u32 %s344, 4
          %s349 = int_to_ptr.hbm [resolvable:$true] %s348
          %351 = dma.vmem_to_hbm [thread:$0]  %s347, 128, %s349, %s329
        $region32: #{tpu_custom_call.1} parent=23 // pred_fallthru
          _
        // Predicated region
        $region33: #{tpu_custom_call.1} parent=23 // pred_check
          %p352 = pneg %p95
        $region34: #{tpu_custom_call.1} parent=23 // pred_check_branch
          %354 = sbr.rel (%p352) target = $region36
        $region35: #{tpu_custom_call.1} parent=23 // pred_region
          %356 = vsyncadd %s334, 0
          %s357 = smul.addr %s25, 8
          %s358 = scalar_lea.hbm %s3, %s357
          %s360 = sshll.u32 %s337, 4
          %s361 = int_to_ptr.vmem [resolvable:$true] %s360
          %s362 = sshll.u32 %s358, 4
          %s363 = int_to_ptr.hbm [resolvable:$true] %s362
          %365 = dma.vmem_to_hbm [thread:$0]  %s361, 128, %s363, %s334
        $region36: #{tpu_custom_call.1} parent=23 // pred_fallthru
          _
      $region24: #{tpu_custom_call.1} parent=5 // pred_fallthru
        _
      %p366 = scmp.le.s32.totalorder 2, %s20
      // Predicated region
      $region37: #{tpu_custom_call.1} parent=5 // pred_check
        %p367 = pneg %p366
      $region38: #{tpu_custom_call.1} parent=5 // pred_check_branch
        %369 = sbr.rel (%p367) target = $region40
      $region39: #{tpu_custom_call.1} parent=5 // pred_region
        %s370 = ssub.s32 %s20, 2
        // Predicated region
        $region41: #{tpu_custom_call.1} parent=39 // pred_check
          %p371 = pneg %p75
        $region42: #{tpu_custom_call.1} parent=39 // pred_check_branch
          %373 = sbr.rel (%p371) target = $region44
        $region43: #{tpu_custom_call.1} parent=39 // pred_region
          %s374 = sand.u32 %s60, 1
          %s375 = scalar_lea.sflag [#allocation6], %s374
          %s376 = sand.u32 %s60, 1
          %s377 = smul.addr %s376, 8
          %s378 = scalar_lea.vmem [#allocation7], %s377
          %380 = dma.done %s375, 128
        $region44: #{tpu_custom_call.1} parent=39 // pred_fallthru
          _
        // Predicated region
        $region45: #{tpu_custom_call.1} parent=39 // pred_check
          %p381 = pneg %p101
        $region46: #{tpu_custom_call.1} parent=39 // pred_check_branch
          %383 = sbr.rel (%p381) target = $region48
        $region47: #{tpu_custom_call.1} parent=39 // pred_region
          %s384 = sand.u32 %s86, 1
          %s385 = scalar_lea.sflag [#allocation9], %s384
          %s386 = sand.u32 %s86, 1
          %s387 = smul.addr %s386, 8
          %s388 = scalar_lea.vmem [#allocation8], %s387
          %390 = dma.done %s385, 128
        $region48: #{tpu_custom_call.1} parent=39 // pred_fallthru
          _
      $region40: #{tpu_custom_call.1} parent=5 // pred_fallthru
        _
    $region6: #{tpu_custom_call.1} parent=1 // loop_footer
      %s24 = sadd.s32 1, %s20
    $region7: #{tpu_custom_call.1} parent=1 // loop_footer_branch
      %19 = sbr.rel target = $region3
    $region8: #{tpu_custom_call.1} parent=1 // loop_exit
      _
    %391 = vsyncpa [#allocation5], 1
    %s392 = scalar_lea.sflag [#allocation5], 1
    %393 = vsyncpa %s392, 1
    %394 = vsyncpa [#allocation6], 1
    %s395 = scalar_lea.sflag [#allocation6], 1
    %396 = vsyncpa %s395, 1
    %397 = vsyncpa [#allocation9], 1
    %s398 = scalar_lea.sflag [#allocation9], 1
    %399 = vsyncpa %s398, 1

</llo_original>
